<compile_context>
chip_gen: v7x
topology: tpu7x:2x2x1
jax: 0.10.0
libtpu: 0.0.40
codegen_flags: <defaults>
</compile_context>

<pallas_src>
import functools
import math

import jax
import jax.numpy as jnp
from jax.experimental import pallas as pl
from jax.experimental.pallas import tpu as pltpu


def _pos_enc_kernel(scale_ref, x_ref, pe_ref, o_ref, *, batch, d_model,
                    unroll_batch):
    # scale_ref: (1,) f32 scalar in SMEM
    # x_ref:     (tS, batch*D) tile of the flattened input (VMEM)
    # pe_ref:    (tS, D)       tile of the positional-encoding table (VMEM)
    # o_ref:     (tS, batch*D) output tile
    scale = scale_ref[0]
    # Scale on the narrow (tS, D) tile only -- never on the full width.
    pe_scaled = scale * pe_ref[...]
    if unroll_batch:
        # D % 128 == 0: per-batch D-wide slices -> lane-dense unmasked stores,
        # no (tS, batch*D)-sized VMEM temporaries.
        for b in range(batch):
            sl = pl.ds(b * d_model, d_model)          # static, 128-aligned
            o_ref[:, sl] = (x_ref[:, sl] + pe_scaled).astype(o_ref.dtype)
    else:
        pe_rep = jnp.tile(pe_scaled, (1, batch))      # (tS, batch*D)
        o_ref[...] = (x_ref[...] + pe_rep).astype(o_ref.dtype)


def _vmem_capacity_bytes():
    """Per-core VMEM capacity; conservative 64 MiB fallback (v7x)."""
    try:
        cap = int(getattr(pltpu.get_tpu_info(), "vmem_capacity_bytes"))
        if cap > 0:
            return cap
    except Exception:
        pass
    return 64 * 1024 * 1024


def _sublane_multiple(itemsize):
    # Sub-32-bit dtypes pack rows along sublanes -> taller minimum tiles.
    return {4: 8, 2: 16, 1: 32}.get(itemsize, 8)


def _choose_tiles(S, B, D, itemsize, budget_bytes, unroll_batch):
    """Pick (row_tile ts, batch_tile bt) under a VMEM budget."""
    sub = _sublane_multiple(itemsize)

    def row_bytes(bt_):
        # Double-buffered pipelined tiles (x, out, pe) + f32 in-kernel temps.
        pipelined = 2 * itemsize * (2 * bt_ * D + D)
        scratch = 4 * 2 * (D if unroll_batch else bt_ * D)
        return pipelined + scratch

    # Batch tiling only when the lane block stays 128-aligned (D % 128 == 0);
    # otherwise bt == B so the lane block equals the full extent B*D.
    bt = B
    if unroll_batch and B > 1:
        for cand in sorted((d for d in range(1, B + 1) if B % d == 0),
                           reverse=True):
            bt = cand
            if sub * row_bytes(cand) <= budget_bytes:
                break

    # Rows that fit the budget.
    ts = max(sub, budget_bytes // max(row_bytes(bt), 1))
    # Prefer >= 4 grid steps along S (keeps both v7x TensorCores streaming and
    # double-buffering effective) but keep each x tile >= ~1 MiB (roofline
    # plateau on all generations).
    min_ts = max(sub, pl.cdiv(1 << 20, max(bt * D * itemsize, 1)))
    ts = min(ts, max(min_ts, pl.cdiv(S, 4)))
    # Don't exceed the array; round to the dtype-correct sublane multiple.
    ts = min(ts, max(S, sub))
    ts = max(sub, (ts // sub) * sub)
    return ts, bt


def positional_encoding_forward(x, pe, scale, *, donate_x=False):
    """x: (S, B, D); pe: (max_len, 1, D); scale: (1,). Returns (S, B, D)."""
    S, B, D = x.shape
    max_len = pe.shape[0]
    assert S <= max_len, "sequence length exceeds positional-encoding table"

    # Lane-dense presentation: last dim B*D, sublane dim = S tile.  These
    # reshapes are free row-major layout changes in the XLA wrapper.
    x2d = x.reshape(S, B * D)
    pe2d = pe.reshape(max_len, D)    # full table; BlockSpec reads only rows < S

    itemsize = x2d.dtype.itemsize
    vmem_cap = _vmem_capacity_bytes()
    budget = int(vmem_cap * 0.375)       # chip-aware pipelined-tile budget
    vmem_limit = int(vmem_cap * 0.72)    # headroom for Mosaic internal scratch

    unroll_batch = (D % 128 == 0)
    ts, bt = _choose_tiles(S, B, D, itemsize, budget, unroll_batch)
    grid = (pl.cdiv(S, ts), B // bt)

    extra = {}
    if donate_x:
        # x is input index 1 (after scale): alias to the output to avoid an
        # extra HBM allocation when x is dead after this op.
        extra["input_output_aliases"] = {1: 0}

    cost = pl.CostEstimate(
        flops=2 * S * B * D,
        transcendentals=0,
        bytes_accessed=2 * S * B * D * itemsize + S * D * pe2d.dtype.itemsize,
    )

    out2d = pl.pallas_call(
        functools.partial(_pos_enc_kernel, batch=bt, d_model=D,
                          unroll_batch=unroll_batch),
        out_shape=jax.ShapeDtypeStruct((S, B * D), x.dtype),
        grid=grid,
        in_specs=[
            pl.BlockSpec(memory_space=pltpu.SMEM),              # scale scalar
            pl.BlockSpec((ts, bt * D), lambda i, j: (i, j)),    # x rows
            pl.BlockSpec((ts, D), lambda i, j: (i, 0)),         # pe rows
        ],
        out_specs=pl.BlockSpec((ts, bt * D), lambda i, j: (i, j)),
        compiler_params=pltpu.CompilerParams(
            dimension_semantics=("parallel", "parallel"),
            vmem_limit_bytes=vmem_limit,
        ),
        cost_estimate=cost,
        **extra,
    )(scale, x2d, pe2d)

    return out2d.reshape(S, B, D)


def make_pe_table(d_model, max_len=1000, dtype=jnp.float32):
    """Deterministic sinusoidal table, identical to the PyTorch __init__."""
    position = jnp.arange(max_len, dtype=jnp.float32)[:, None]        # (max_len, 1)
    div_term = jnp.exp(
        jnp.arange(0, d_model, 2, dtype=jnp.float32)
        * (-math.log(10000.0) / d_model)
    )                                                                  # (d_model//2,)
    pe = jnp.zeros((max_len, d_model), dtype=jnp.float32)
    pe = pe.at[:, 0::2].set(jnp.sin(position * div_term))
    pe = pe.at[:, 1::2].set(jnp.cos(position * div_term))
    # pe.unsqueeze(0).transpose(0, 1)  ->  (max_len, 1, d_model)
    return pe[:, None, :].astype(dtype)


if __name__ == "__main__":
    seq_len, batch, d_model = 8, 2, 32
    max_len = 1000

    key = jax.random.PRNGKey(0)
    x = jax.random.normal(key, (seq_len, batch, d_model), dtype=jnp.float32)

    # Parameters, deterministic (matches nn.Parameter(torch.ones(1)))
    scale = jnp.ones((1,), dtype=jnp.float32)
    pe = make_pe_table(d_model, max_len=max_len)

    out = positional_encoding_forward(x, pe, scale)
    out = jax.block_until_ready(out)

    # Sanity check against plain-JAX reference
    ref = x + scale[0] * pe[:seq_len]
    assert out.shape == (seq_len, batch, d_model)
    assert jnp.allclose(out, ref, atol=1e-6, rtol=1e-6)

    print("KERNEL_OK")
</pallas_src>

<mosaic_0001>
module attributes {stable_mosaic.version = 11 : i64} {
  func.func @_pos_enc_kernel(%arg0: i32, %arg1: i32, %arg2: memref<1xf32, #tpu.memory_space<smem>>, %arg3: memref<8x64xf32, #tpu.memory_space<vmem>>, %arg4: memref<8x32xf32, #tpu.memory_space<vmem>>, %arg5: memref<8x64xf32, #tpu.memory_space<vmem>>) attributes {dimension_semantics = [#tpu.dimension_semantics<parallel>, #tpu.dimension_semantics<parallel>], iteration_bounds = array<i64: 1, 1>, scalar_prefetch = 0 : i64, scratch_operands = 0 : i64, tpu.core_type = #tpu.core_type<tc>, window_params = [{transform_indices = @transform_0, window_bounds = array<i64: 1>}, {transform_indices = @transform_1, window_bounds = array<i64: 8, 64>}, {transform_indices = @transform_2, window_bounds = array<i64: 8, 32>}, {transform_indices = @transform_3, window_bounds = array<i64: 8, 64>}]} {
    %c0 = arith.constant 0 : index
    %0 = memref.load %arg2[%c0] : memref<1xf32, #tpu.memory_space<smem>>
    %c0_0 = arith.constant 0 : index
    %c0_1 = arith.constant 0 : index
    %1 = vector.load %arg4[%c0_0, %c0_1] : memref<8x32xf32, #tpu.memory_space<vmem>>, vector<8x32xf32>
    %2 = vector.broadcast %0 : f32 to vector<8x32xf32>
    %3 = arith.mulf %2, %1 : vector<8x32xf32>
    %4 = tpu.concatenate %3, %3 in 1 : vector<8x32xf32>, vector<8x32xf32> -> vector<8x64xf32>
    %c0_2 = arith.constant 0 : index
    %c0_3 = arith.constant 0 : index
    %5 = vector.load %arg3[%c0_2, %c0_3] : memref<8x64xf32, #tpu.memory_space<vmem>>, vector<8x64xf32>
    %6 = arith.addf %5, %4 : vector<8x64xf32>
    %c0_4 = arith.constant 0 : index
    %c0_5 = arith.constant 0 : index
    %7 = vector.load %arg5[%c0_4, %c0_5] : memref<8x64xf32, #tpu.memory_space<vmem>>, vector<8x64xf32>
    tpu.vector_store %arg5[%c0_4, %c0_5], %6 {strides = array<i32>} : memref<8x64xf32, #tpu.memory_space<vmem>>, vector<8x64xf32>,
    return
  }
  func.func @transform_0(%arg0: i32, %arg1: i32) -> i32 {
    %c0_i32 = arith.constant 0 : i32
    %c0_i32_0 = arith.constant 0 : i32
    return %c0_i32 : i32
  }
  func.func @transform_1(%arg0: i32, %arg1: i32) -> (i32, i32) {
    %c0_i32 = arith.constant 0 : i32
    return %arg0, %arg1 : i32, i32
  }
  func.func @transform_2(%arg0: i32, %arg1: i32) -> (i32, i32) {
    %c0_i32 = arith.constant 0 : i32
    %c0_i32_0 = arith.constant 0 : i32
    return %arg0, %c0_i32 : i32, i32
  }
  func.func @transform_3(%arg0: i32, %arg1: i32) -> (i32, i32) {
    %c0_i32 = arith.constant 0 : i32
    return %arg0, %arg1 : i32, i32
  }
}

</mosaic_0001>

<llo_original>
// kernel: tpu_custom_call.1
$region0: #{tpu_custom_call.1}
  #allocation0 [shape = 'u32[]', space=smem, size = 0x4, offset = 0x4, fixed_abs, tag = 'smem constant byte address 0x4 - core index']
  #allocation1 [shape = 'u32[144,128]{1,0:T(1,128)}', space=vmem, size = 0x12000, scoped, tag = 'internal scratch']
  #allocation2 [shape = 'f32[1]{0:T(128)S(6)}', space=smem, size = 0x200, scoped, tag = 'scoped memory for tpu_custom_call.1']
  %s0 = inlined_call_operand.<no memory space> [shape: f32[1], index: 0, kind: input, shape index: {}]
  %s1 = inlined_call_operand.vmem [shape: f32[8,64], index: 1, kind: input, shape index: {}]
  %s2 = inlined_call_operand.vmem [shape: f32[1000,32], index: 2, kind: input, shape index: {}]
  %s3 = inlined_call_operand.hbm [shape: f32[8,64], index: 3, kind: output, shape index: {}]
  %s4 = sld [smem:[#allocation0]]
  $region22: #{tpu_custom_call.1} parent=0
    _
  %s6 = ssub.s32 1, %s4
  %s7 = scalar_select 0, %s6, %s4
  %8 = sst [smem:[#allocation2]] %s0
  $region1: #{tpu_custom_call.1} parent=0
    #allocation3 [shape = 'u8[4096]{0}', space=vmem, size = 0x1000, scoped, tag = 'output window, operand 0, single buffered']
    #allocation4 [shape = 's32[1]{0}', space=sflag, size = 0x4, scoped, tag = 'scoped memory for tpu_custom_call.1']
    %9 = vsyncpa [#allocation4], 0
    // Predicated region
    $region2: #{tpu_custom_call.1} parent=1 // pred_check
      _
    $region3: #{tpu_custom_call.1} parent=1 // pred_check_branch
      %11 = sbr.rel (0) target = $region5
    $region4: #{tpu_custom_call.1} parent=1 // pred_region
      _
    $region5: #{tpu_custom_call.1} parent=1 // pred_fallthru
      _
    // Predicated region
    $region6: #{tpu_custom_call.1} parent=1 // pred_check
      _
    $region7: #{tpu_custom_call.1} parent=1 // pred_check_branch
      %13 = sbr.rel (0) target = $region9
    $region8: #{tpu_custom_call.1} parent=1 // pred_region
      _
    $region9: #{tpu_custom_call.1} parent=1 // pred_fallthru
      _
    // Predicated region
    $region10: #{tpu_custom_call.1} parent=1 // pred_check
      _
    $region11: #{tpu_custom_call.1} parent=1 // pred_check_branch
      %15 = sbr.rel (0) target = $region13
    $region12: #{tpu_custom_call.1} parent=1 // pred_region
      _
    $region13: #{tpu_custom_call.1} parent=1 // pred_fallthru
      _
    %s16 = sld [smem:[#allocation2]]
    %v17 = vld [vmem:[%s2] sm:$0xff]
    %v18 = vstv %s16
    %v19 = vmul.f32 %v18, %v17
    %21 = vrot.lane.b32.xlu0 %v19, 32
    %v22 = vpop.permute.xlu0 %21
    %vm24 = vcmask 261120
    %v25 = vsel %vm24, %v19, %v22
    %v26 = vld [vmem:[%s1] sm:$0xff]
    %v27 = vadd.f32 %v26, %v25
    %vm28 = vcmask 523264
    %29 = vst.msk [vmem:[#allocation3] sm:$0xff] %vm28, %v27
    // Predicated region
    $region14: #{tpu_custom_call.1} parent=1 // pred_check
      _
    $region15: #{tpu_custom_call.1} parent=1 // pred_check_branch
      %31 = sbr.rel (0) target = $region17
    $region16: #{tpu_custom_call.1} parent=1 // pred_region
      %s33 = ssub.s32 128, 128
      %34 = vsyncadd [#allocation4], %s33
      %s36 = sshll.u32 [#allocation3], 4
      %s37 = int_to_ptr.vmem [resolvable:$true] %s36
      %39 = dma.vmem_to_hbm [thread:$0]  %s37, 128, %s3, [#allocation4]
    $region17: #{tpu_custom_call.1} parent=1 // pred_fallthru
      _
    // Predicated region
    $region18: #{tpu_custom_call.1} parent=1 // pred_check
      _
    $region19: #{tpu_custom_call.1} parent=1 // pred_check_branch
      %41 = sbr.rel (0) target = $region21
    $region20: #{tpu_custom_call.1} parent=1 // pred_region
      %42 = dma.done [#allocation4], 128
    $region21: #{tpu_custom_call.1} parent=1 // pred_fallthru
      _
    %43 = vsyncpa [#allocation4], 1

</llo_original>
